<compile_context>
chip_gen: v7x
topology: tpu7x:2x2x1
jax: 0.10.0
libtpu: 0.0.40
codegen_flags: <defaults>
</compile_context>

<pallas_src>
import functools

import jax
import jax.numpy as jnp
from jax.experimental import pallas as pl
from jax.experimental.pallas import tpu as pltpu


# ---------------------------------------------------------------------------
# Tiling helpers.
# ---------------------------------------------------------------------------

_TN_CAP = 32768          # lane-tile cap (multiple of 128)
_VMEM_BUDGET = 24 << 20  # target VMEM working set for streamed tiles


def _choose_pixel_tile(hw, c, hidden, n_streams, itemsize, out_itemsize):
    """Pixel (lane) tile: multiple of 128, fits a VMEM budget, divides HW
    exactly whenever HW is a multiple of 128 (=> no padding, no ragged block)."""
    # Approximate VMEM bytes per pixel column held at once:
    #   double-buffered input tiles + double-buffered output tile (preds)
    #   + f32 intermediates (h, heads, err, hr copy).
    bpp = (n_streams * 2 * c * itemsize
           + 2 * c * out_itemsize
           + (hidden + 6 * c) * 4)
    cap = max(128, (_VMEM_BUDGET // max(bpp, 1)) // 128 * 128)
    cap = min(cap, _TN_CAP)
    if hw % 128 == 0:
        # Largest multiple of 128 that divides hw and is <= cap.
        n128 = hw // 128
        best = 1
        d = 1
        while d * d <= n128:
            if n128 % d == 0:
                for q in (d, n128 // d):
                    if q * 128 <= cap and q > best:
                        best = q
            d += 1
        return best * 128
    # Ragged fallback: boundary block handled by Pallas + in-kernel masking.
    hw_pad = ((hw + 127) // 128) * 128
    return min(hw_pad, cap)


def _vmem_limit_bytes(tn, c, hidden, n_streams, itemsize, out_itemsize):
    est = (n_streams * 2 * c * tn * itemsize
           + 2 * c * tn * out_itemsize
           + (hidden + 6 * c) * tn * 4
           + (1 << 20))
    # <= 48 MiB keeps us safe on v7x (64 MiB physical); v5e/v6e have headroom.
    return int(min(48 << 20, max(32 << 20, 2 * est)))


# ---------------------------------------------------------------------------
# Kernels.  Layout: channels on the sublane axis, pixels on the lane axis.
# ---------------------------------------------------------------------------

def _loss_kernel(t1_ref, t2_ref, hr_ref,
                 w1a_ref, w1b_ref, b1_ref, wh_ref, bh_ref,
                 psum_ref, *, C, TN, HW, ragged):
    """Accumulate sum of |img_out - hr| + |img_fre - hr| over pixel tiles."""
    j = pl.program_id(1)

    @pl.when(j == 0)
    def _():
        psum_ref[...] = jnp.zeros_like(psum_ref)

    # Hidden layer (1x1 conv == channel matmul) + ReLU; the [t1|t2_lr] concat
    # is avoided by splitting w1 into two halves and summing the dots.
    h = (jnp.dot(w1a_ref[...], t1_ref[0], preferred_element_type=jnp.float32)
         + jnp.dot(w1b_ref[...], t2_ref[0], preferred_element_type=jnp.float32)
         + b1_ref[...].astype(jnp.float32))
    h = jnp.maximum(h, 0.0)

    # Fused heads: one (2C, hidden) @ (hidden, TN) matmul -> img_out & img_fre.
    heads = (jnp.dot(wh_ref[...], h.astype(wh_ref.dtype),
                     preferred_element_type=jnp.float32)
             + bh_ref[...].astype(jnp.float32))                 # (2C, TN)

    # Dense (2C, TN) L1 stage (full 8-sublane vregs at C=4).
    hr = hr_ref[0].astype(jnp.float32)                          # (C, TN)
    hr2 = jnp.concatenate([hr, hr], axis=0)                     # (2C, TN)
    err = jnp.abs(heads - hr2)

    if ragged:  # static: only in the rare HW % 128 != 0 fallback
        col = jax.lax.broadcasted_iota(jnp.int32, (2 * C, TN), 1) + j * TN
        err = jnp.where(col < HW, err, 0.0)  # NaN-safe select of OOB columns

    psum_ref[...] += jnp.sum(err).reshape(1, 1, 1)


def _preds_kernel(t1_ref, t2_ref,
                  w1a_ref, w1b_ref, b1_ref, wsp_ref, bsp_ref,
                  sp_ref):
    """Spatial head only (return_preds=True path skips loss and img_fre)."""
    h = (jnp.dot(w1a_ref[...], t1_ref[0], preferred_element_type=jnp.float32)
         + jnp.dot(w1b_ref[...], t2_ref[0], preferred_element_type=jnp.float32)
         + b1_ref[...].astype(jnp.float32))
    h = jnp.maximum(h, 0.0)
    sp = (jnp.dot(wsp_ref[...], h.astype(wsp_ref.dtype),
                  preferred_element_type=jnp.float32)
          + bsp_ref[...].astype(jnp.float32))
    sp_ref[0] = sp.astype(sp_ref.dtype)


# ---------------------------------------------------------------------------
# Wrapper (mirrors FSMNetModelWrapper.forward).
# ---------------------------------------------------------------------------

def fsmnet_wrapper_forward(batch_data, params, return_preds=False,
                           io_dtype=jnp.bfloat16):
    t1_hr = batch_data["t1_hr"]   # (B, C, H, W)
    t2_hr = batch_data["t2_hr"]   # (B, C, H, W)
    t2_lr = batch_data["t2_lr"]   # (B, C, H, W)

    B, C, H, W = t1_hr.shape
    HW = H * W

    w1, b1, wsp, bsp, wfre, bfre = params
    hidden = w1.shape[1]

    in_itemsize = jnp.dtype(io_dtype).itemsize
    out_itemsize = in_itemsize if return_preds else 0
    n_streams = 2 if return_preds else 3
    TN = _choose_pixel_tile(HW, C, hidden, n_streams, in_itemsize, out_itemsize)
    n_tiles = pl.cdiv(HW, TN)
    ragged = (n_tiles * TN != HW)   # only when HW % 128 != 0

    def to_lanes(a):
        # NCHW -> (B, C, H*W): pure reshape; no pad, no transpose, no concat.
        # (Ideally the producer already emits io_dtype so the cast is free.)
        a = a.reshape(B, C, HW)
        if a.dtype != io_dtype:
            a = a.astype(io_dtype)
        return a

    t1 = to_lanes(t1_hr)
    t2l = to_lanes(t2_lr)

    # Repack (tiny) weights for channels-on-sublane / pixels-on-lane layout.
    w1a = jnp.asarray(w1[:C, :].T, io_dtype)             # (hidden, C) - t1_hr half
    w1b = jnp.asarray(w1[C:, :].T, io_dtype)             # (hidden, C) - t2_lr half
    b1c = jnp.asarray(b1.T, io_dtype)                    # (hidden, 1)

    pix_spec = pl.BlockSpec((1, C, TN), lambda b, j: (b, 0, j))
    w_spec = lambda shape: pl.BlockSpec(shape, lambda b, j: (0, 0))
    vmem_limit = _vmem_limit_bytes(TN, C, hidden, n_streams,
                                   in_itemsize, out_itemsize)

    if return_preds:
        wspc = jnp.asarray(wsp.T, io_dtype)              # (C, hidden)
        bspc = jnp.asarray(bsp.T, io_dtype)              # (C, 1)
        sp = pl.pallas_call(
            _preds_kernel,
            out_shape=jax.ShapeDtypeStruct((B, C, HW), io_dtype),
            grid=(B, n_tiles),
            in_specs=[pix_spec, pix_spec,
                      w_spec((hidden, C)), w_spec((hidden, C)),
                      w_spec((hidden, 1)),
                      w_spec((C, hidden)), w_spec((C, 1))],
            out_specs=pl.BlockSpec((1, C, TN), lambda b, j: (b, 0, j)),
            compiler_params=pltpu.CompilerParams(
                dimension_semantics=("parallel", "parallel"),
                vmem_limit_bytes=vmem_limit),
            cost_estimate=pl.CostEstimate(
                flops=6 * B * HW * hidden * C,
                transcendentals=0,
                bytes_accessed=(2 * B * C * HW * in_itemsize
                                + B * C * HW * out_itemsize)),
        )(t1, t2l, w1a, w1b, b1c, wspc, bspc)
        # TODO(synk): in the ragged (HW % 128 != 0) fallback this relies on
        # Pallas dropping out-of-bounds boundary-block stores.
        spatial = sp.reshape(B, C, H, W)
        return spatial, t2_hr

    hr = to_lanes(t2_hr)
    wh = jnp.concatenate([wsp.T, wfre.T], axis=0).astype(io_dtype)   # (2C, hidden)
    bh = jnp.concatenate([bsp.T, bfre.T], axis=0).astype(io_dtype)   # (2C, 1)

    psum = pl.pallas_call(
        functools.partial(_loss_kernel, C=C, TN=TN, HW=HW, ragged=ragged),
        out_shape=jax.ShapeDtypeStruct((B, 1, 1), jnp.float32),
        grid=(B, n_tiles),
        in_specs=[pix_spec, pix_spec, pix_spec,
                  w_spec((hidden, C)), w_spec((hidden, C)),
                  w_spec((hidden, 1)),
                  w_spec((2 * C, hidden)), w_spec((2 * C, 1))],
        # Output block constant along the (inner, arbitrary) tile axis ->
        # VMEM-resident accumulator, one HBM write per batch element.
        out_specs=pl.BlockSpec((1, 1, 1), lambda b, j: (b, 0, 0)),
        compiler_params=pltpu.CompilerParams(
            dimension_semantics=("parallel", "arbitrary"),
            vmem_limit_bytes=vmem_limit),
        cost_estimate=pl.CostEstimate(
            flops=8 * B * HW * hidden * C,
            transcendentals=0,
            bytes_accessed=3 * B * C * HW * in_itemsize + 4 * B),
    )(t1, t2l, hr, w1a, w1b, b1c, wh, bh)

    # loss = L1(img_out, t2_hr) + L1(img_fre, t2_hr); both means share the
    # true denominator B*C*H*W (in f32).
    return jnp.sum(psum) / (B * C * HW)


# ---------------------------------------------------------------------------
# Parameters + pure-JAX reference (for a loose numerics check in __main__).
# ---------------------------------------------------------------------------

def init_params(C, hidden, key):
    k1, k2, k3, k4, k5, k6 = jax.random.split(key, 6)
    w1 = 0.1 * jax.random.normal(k1, (2 * C, hidden), jnp.float32)
    b1 = 0.1 * jax.random.normal(k2, (1, hidden), jnp.float32)
    wsp = 0.1 * jax.random.normal(k3, (hidden, C), jnp.float32)
    bsp = 0.1 * jax.random.normal(k4, (1, C), jnp.float32)
    wfre = 0.1 * jax.random.normal(k5, (hidden, C), jnp.float32)
    bfre = 0.1 * jax.random.normal(k6, (1, C), jnp.float32)
    return (w1, b1, wsp, bsp, wfre, bfre)


def reference_loss(batch_data, params, io_dtype=jnp.bfloat16):
    """f32 math on io_dtype-rounded operands; matches kernel up to bf16 noise."""
    def rnd(a):
        return a.astype(io_dtype).astype(jnp.float32)

    t1_hr, t2_hr, t2_lr = (batch_data[k] for k in ("t1_hr", "t2_hr", "t2_lr"))
    B, C, H, W = t1_hr.shape
    x1 = rnd(t1_hr).reshape(B, C, -1)
    x2 = rnd(t2_lr).reshape(B, C, -1)
    hr = rnd(t2_hr).reshape(B, C, -1)
    w1, b1, wsp, bsp, wfre, bfre = params
    w1a, w1b = rnd(w1[:C].T), rnd(w1[C:].T)
    h = (jnp.einsum("hc,bcn->bhn", w1a, x1)
         + jnp.einsum("hc,bcn->bhn", w1b, x2)
         + rnd(b1.T)[None])
    h = rnd(jnp.maximum(h, 0.0))
    sp = jnp.einsum("ch,bhn->bcn", rnd(wsp.T), h) + rnd(bsp.T)[None]
    fre = jnp.einsum("ch,bhn->bcn", rnd(wfre.T), h) + rnd(bfre.T)[None]
    return jnp.mean(jnp.abs(sp - hr)) + jnp.mean(jnp.abs(fre - hr))


if __name__ == "__main__":
    B, C, H, W = 2, 4, 16, 16
    hidden = 32

    key = jax.random.PRNGKey(0)
    k_in1, k_in2, k_in3, k_par = jax.random.split(key, 4)

    batch_data = {
        "t1_hr": jax.random.normal(k_in1, (B, C, H, W), jnp.float32),
        "t2_hr": jax.random.normal(k_in2, (B, C, H, W), jnp.float32),
        "t2_lr": jax.random.normal(k_in3, (B, C, H, W), jnp.float32),
    }
    params = init_params(C, hidden, k_par)

    # Loss path (return_preds=False): loss-only kernel, no prediction writes.
    loss = fsmnet_wrapper_forward(batch_data, params, return_preds=False)
    loss = jax.block_until_ready(loss)

    # Preds path (return_preds=True): spatial head only, lane-dense output.
    spatial, t2_hr = fsmnet_wrapper_forward(batch_data, params, return_preds=True)
    jax.block_until_ready(spatial)

    assert loss.shape == () and bool(jnp.isfinite(loss))
    assert spatial.shape == (B, C, H, W)
    assert bool(jnp.all(jnp.isfinite(spatial)))

    # Loose numerics check (bf16 IO vs f32-math reference on bf16 operands).
    ref = reference_loss(batch_data, params)
    assert abs(float(loss) - float(ref)) <= 0.05 * abs(float(ref)) + 1e-3, \
        (float(loss), float(ref))

    print("KERNEL_OK")
</pallas_src>

<mosaic_0001>
module attributes {stable_mosaic.version = 11 : i64} {
  func.func @_loss_kernel(%arg0: i32, %arg1: i32, %arg2: memref<1x4x256xbf16, #tpu.memory_space<vmem>>, %arg3: memref<1x4x256xbf16, #tpu.memory_space<vmem>>, %arg4: memref<1x4x256xbf16, #tpu.memory_space<vmem>>, %arg5: memref<32x4xbf16, #tpu.memory_space<vmem>>, %arg6: memref<32x4xbf16, #tpu.memory_space<vmem>>, %arg7: memref<32x1xbf16, #tpu.memory_space<vmem>>, %arg8: memref<8x32xbf16, #tpu.memory_space<vmem>>, %arg9: memref<8x1xbf16, #tpu.memory_space<vmem>>, %arg10: memref<1x1x1xf32, #tpu.memory_space<vmem>>) attributes {dimension_semantics = [#tpu.dimension_semantics<parallel>, #tpu.dimension_semantics<arbitrary>], iteration_bounds = array<i64: 2, 1>, scalar_prefetch = 0 : i64, scratch_operands = 0 : i64, tpu.core_type = #tpu.core_type<tc>, window_params = [{transform_indices = @transform_0, window_bounds = array<i64: 1, 4, 256>}, {transform_indices = @transform_1, window_bounds = array<i64: 1, 4, 256>}, {transform_indices = @transform_2, window_bounds = array<i64: 1, 4, 256>}, {pipeline_mode = #tpu.pipeline_mode<synchronous>, transform_indices = @transform_3, window_bounds = array<i64: 32, 4>}, {pipeline_mode = #tpu.pipeline_mode<synchronous>, transform_indices = @transform_4, window_bounds = array<i64: 32, 4>}, {pipeline_mode = #tpu.pipeline_mode<synchronous>, transform_indices = @transform_5, window_bounds = array<i64: 32, 1>}, {pipeline_mode = #tpu.pipeline_mode<synchronous>, transform_indices = @transform_6, window_bounds = array<i64: 8, 32>}, {pipeline_mode = #tpu.pipeline_mode<synchronous>, transform_indices = @transform_7, window_bounds = array<i64: 8, 1>}, {transform_indices = @transform_8, window_bounds = array<i64: 1, 1, 1>}]} {
    %c0_i32 = arith.constant 0 : i32
    %0 = arith.cmpi eq, %arg1, %c0_i32 : i32
    %1 = arith.extui %0 : i1 to i32
    %c0_i32_0 = arith.constant 0 : i32
    %2 = arith.cmpi ne, %1, %c0_i32_0 : i32
    scf.if %2 {
      %cst_29 = arith.constant 0.000000e+00 : f32
      %39 = vector.broadcast %cst_29 : f32 to vector<1x1x1xf32>
      %c0_30 = arith.constant 0 : index
      %c0_31 = arith.constant 0 : index
      %c0_32 = arith.constant 0 : index
      %40 = vector.load %arg10[%c0_30, %c0_31, %c0_32] : memref<1x1x1xf32, #tpu.memory_space<vmem>>, vector<1x1x1xf32>
      tpu.vector_store %arg10[%c0_30, %c0_31, %c0_32], %39 {strides = array<i32>} : memref<1x1x1xf32, #tpu.memory_space<vmem>>, vector<1x1x1xf32>,
    } else {
    }
    %c0 = arith.constant 0 : index
    %c0_1 = arith.constant 0 : index
    %3 = vector.load %arg5[%c0, %c0_1] : memref<32x4xbf16, #tpu.memory_space<vmem>>, vector<32x4xbf16>
    %c0_2 = arith.constant 0 : index
    %c0_3 = arith.constant 0 : index
    %c0_4 = arith.constant 0 : index
    %4 = vector.load %arg2[%c0_2, %c0_3, %c0_4] : memref<1x4x256xbf16, #tpu.memory_space<vmem>>, vector<1x4x256xbf16>
    %5 = vector.shape_cast %4 : vector<1x4x256xbf16> to vector<4x256xbf16>
    %cst = arith.constant dense<0.000000e+00> : vector<32x256xf32>
    %6 = tpu.matmul %3, %5, %cst {dimension_numbers = #tpu.dot_dimension_numbers<[1], [0], [0], [1], [0, 0, 1, 1], [], []>} : vector<32x4xbf16>, vector<4x256xbf16>, vector<32x256xf32> -> vector<32x256xf32>
    %c0_5 = arith.constant 0 : index
    %c0_6 = arith.constant 0 : index
    %7 = vector.load %arg6[%c0_5, %c0_6] : memref<32x4xbf16, #tpu.memory_space<vmem>>, vector<32x4xbf16>
    %c0_7 = arith.constant 0 : index
    %c0_8 = arith.constant 0 : index
    %c0_9 = arith.constant 0 : index
    %8 = vector.load %arg3[%c0_7, %c0_8, %c0_9] : memref<1x4x256xbf16, #tpu.memory_space<vmem>>, vector<1x4x256xbf16>
    %9 = vector.shape_cast %8 : vector<1x4x256xbf16> to vector<4x256xbf16>
    %cst_10 = arith.constant dense<0.000000e+00> : vector<32x256xf32>
    %10 = tpu.matmul %7, %9, %cst_10 {dimension_numbers = #tpu.dot_dimension_numbers<[1], [0], [0], [1], [0, 0, 1, 1], [], []>} : vector<32x4xbf16>, vector<4x256xbf16>, vector<32x256xf32> -> vector<32x256xf32>
    %11 = arith.addf %6, %10 : vector<32x256xf32>
    %c0_11 = arith.constant 0 : index
    %c0_12 = arith.constant 0 : index
    %12 = vector.load %arg7[%c0_11, %c0_12] : memref<32x1xbf16, #tpu.memory_space<vmem>>, vector<32x1xbf16>
    %13 = arith.extf %12 : vector<32x1xbf16> to vector<32x1xf32>
    %14 = vector.broadcast %13 : vector<32x1xf32> to vector<32x256xf32>
    %15 = arith.addf %11, %14 : vector<32x256xf32>
    %cst_13 = arith.constant 0.000000e+00 : f32
    %16 = vector.broadcast %cst_13 : f32 to vector<32x256xf32>
    %17 = arith.maximumf %15, %16 : vector<32x256xf32>
    %c0_14 = arith.constant 0 : index
    %c0_15 = arith.constant 0 : index
    %18 = vector.load %arg8[%c0_14, %c0_15] : memref<8x32xbf16, #tpu.memory_space<vmem>>, vector<8x32xbf16>
    %19 = arith.truncf %17 : vector<32x256xf32> to vector<32x256xbf16>
    %cst_16 = arith.constant dense<0.000000e+00> : vector<8x256xf32>
    %20 = tpu.matmul %18, %19, %cst_16 {dimension_numbers = #tpu.dot_dimension_numbers<[1], [0], [0], [1], [0, 0, 1, 1], [], []>} : vector<8x32xbf16>, vector<32x256xbf16>, vector<8x256xf32> -> vector<8x256xf32>
    %c0_17 = arith.constant 0 : index
    %c0_18 = arith.constant 0 : index
    %21 = vector.load %arg9[%c0_17, %c0_18] : memref<8x1xbf16, #tpu.memory_space<vmem>>, vector<8x1xbf16>
    %22 = arith.extf %21 : vector<8x1xbf16> to vector<8x1xf32>
    %23 = vector.broadcast %22 : vector<8x1xf32> to vector<8x256xf32>
    %24 = arith.addf %20, %23 : vector<8x256xf32>
    %c0_19 = arith.constant 0 : index
    %c0_20 = arith.constant 0 : index
    %c0_21 = arith.constant 0 : index
    %25 = vector.load %arg4[%c0_19, %c0_20, %c0_21] : memref<1x4x256xbf16, #tpu.memory_space<vmem>>, vector<1x4x256xbf16>
    %26 = vector.shape_cast %25 : vector<1x4x256xbf16> to vector<4x256xbf16>
    %27 = arith.extf %26 : vector<4x256xbf16> to vector<4x256xf32>
    %28 = tpu.concatenate %27, %27 in 0 : vector<4x256xf32>, vector<4x256xf32> -> vector<8x256xf32>
    %29 = arith.subf %24, %28 : vector<8x256xf32>
    %30 = math.absf %29 : vector<8x256xf32>
    %c0_22 = arith.constant 0 : index
    %c0_23 = arith.constant 0 : index
    %c0_24 = arith.constant 0 : index
    %31 = vector.load %arg10[%c0_22, %c0_23, %c0_24] : memref<1x1x1xf32, #tpu.memory_space<vmem>>, vector<1x1x1xf32>
    %32 = vector.shape_cast %30 : vector<8x256xf32> to vector<1x8x256xf32>
    %cst_25 = arith.constant dense<0.000000e+00> : vector<1xf32>
    %33 = vector.multi_reduction <add>, %32, %cst_25 [1, 2] : vector<1x8x256xf32> to vector<1xf32>
    %34 = vector.shape_cast %33 : vector<1xf32> to vector<1x1x1xf32>
    %35 = vector.extract %34[0, 0, 0] : f32 from vector<1x1x1xf32>
    %36 = vector.broadcast %35 : f32 to vector<1x1x1xf32>
    %37 = arith.addf %31, %36 : vector<1x1x1xf32>
    %c0_26 = arith.constant 0 : index
    %c0_27 = arith.constant 0 : index
    %c0_28 = arith.constant 0 : index
    %38 = vector.load %arg10[%c0_26, %c0_27, %c0_28] : memref<1x1x1xf32, #tpu.memory_space<vmem>>, vector<1x1x1xf32>
    tpu.vector_store %arg10[%c0_26, %c0_27, %c0_28], %37 {strides = array<i32>} : memref<1x1x1xf32, #tpu.memory_space<vmem>>, vector<1x1x1xf32>,
    return
  }
  func.func @transform_0(%arg0: i32, %arg1: i32) -> (i32, i32, i32) {
    %c0_i32 = arith.constant 0 : i32
    %c0_i32_0 = arith.constant 0 : i32
    return %arg0, %c0_i32, %arg1 : i32, i32, i32
  }
  func.func @transform_1(%arg0: i32, %arg1: i32) -> (i32, i32, i32) {
    %c0_i32 = arith.constant 0 : i32
    %c0_i32_0 = arith.constant 0 : i32
    return %arg0, %c0_i32, %arg1 : i32, i32, i32
  }
  func.func @transform_2(%arg0: i32, %arg1: i32) -> (i32, i32, i32) {
    %c0_i32 = arith.constant 0 : i32
    %c0_i32_0 = arith.constant 0 : i32
    return %arg0, %c0_i32, %arg1 : i32, i32, i32
  }
  func.func @transform_3(%arg0: i32, %arg1: i32) -> (i32, i32) {
    %c0_i32 = arith.constant 0 : i32
    %c0_i32_0 = arith.constant 0 : i32
    %c0_i32_1 = arith.constant 0 : i32
    return %c0_i32, %c0_i32_0 : i32, i32
  }
  func.func @transform_4(%arg0: i32, %arg1: i32) -> (i32, i32) {
    %c0_i32 = arith.constant 0 : i32
    %c0_i32_0 = arith.constant 0 : i32
    %c0_i32_1 = arith.constant 0 : i32
    return %c0_i32, %c0_i32_0 : i32, i32
  }
  func.func @transform_5(%arg0: i32, %arg1: i32) -> (i32, i32) {
    %c0_i32 = arith.constant 0 : i32
    %c0_i32_0 = arith.constant 0 : i32
    %c0_i32_1 = arith.constant 0 : i32
    return %c0_i32, %c0_i32_0 : i32, i32
  }
  func.func @transform_6(%arg0: i32, %arg1: i32) -> (i32, i32) {
    %c0_i32 = arith.constant 0 : i32
    %c0_i32_0 = arith.constant 0 : i32
    %c0_i32_1 = arith.constant 0 : i32
    return %c0_i32, %c0_i32_0 : i32, i32
  }
  func.func @transform_7(%arg0: i32, %arg1: i32) -> (i32, i32) {
    %c0_i32 = arith.constant 0 : i32
    %c0_i32_0 = arith.constant 0 : i32
    %c0_i32_1 = arith.constant 0 : i32
    return %c0_i32, %c0_i32_0 : i32, i32
  }
  func.func @transform_8(%arg0: i32, %arg1: i32) -> (i32, i32, i32) {
    %c0_i32 = arith.constant 0 : i32
    %c0_i32_0 = arith.constant 0 : i32
    %c0_i32_1 = arith.constant 0 : i32
    return %arg0, %c0_i32, %c0_i32_0 : i32, i32, i32
  }
}

</mosaic_0001>

<llo_original>
// kernel: tpu_custom_call.1
$region0: #{tpu_custom_call.1}
  #allocation0 [shape = 'u32[]', space=smem, size = 0x4, offset = 0x4, fixed_abs, tag = 'smem constant byte address 0x4 - core index']
  #allocation1 [shape = 'u32[144,128]{1,0:T(1,128)}', space=vmem, size = 0x12000, scoped, tag = 'internal scratch']
  %s0 = inlined_call_operand.vmem [shape: bf16[2,4,256], index: 0, kind: input, shape index: {}]
  %s1 = inlined_call_operand.vmem [shape: bf16[2,4,256], index: 1, kind: input, shape index: {}]
  %s2 = inlined_call_operand.vmem [shape: bf16[2,4,256], index: 2, kind: input, shape index: {}]
  %s3 = inlined_call_operand.vmem [shape: bf16[32,4], index: 3, kind: input, shape index: {}]
  %s4 = inlined_call_operand.vmem [shape: bf16[32,4], index: 4, kind: input, shape index: {}]
  %s5 = inlined_call_operand.vmem [shape: bf16[32,1], index: 5, kind: input, shape index: {}]
  %s6 = inlined_call_operand.vmem [shape: bf16[8,32], index: 6, kind: input, shape index: {}]
  %s7 = inlined_call_operand.vmem [shape: bf16[8,1], index: 7, kind: input, shape index: {}]
  %s8 = inlined_call_operand.vmem [shape: f32[2,1,1], index: 8, kind: output, shape index: {}]
  %s9 = sld [smem:[#allocation0]]
  $region69: #{tpu_custom_call.1} parent=0
    _
  %s11 = ssub.s32 1, %s9
  %s12 = scalar_select 0, %s11, %s9
  loop: start=0, step=1, limit=4
  $region2: #{tpu_custom_call.1} parent=0 // loop_pre_header
    _
  $region3: #{tpu_custom_call.1} parent=0 // loop_header
    %s14 = sphi 0, %s18
    %p15 = scmp.ge.s32.totalorder %s14, 4
    %s21 = sphi 0, %s33
    %s22 = sphi 0, %s29
    %s23 = sphi 0, %s21
    %s24 = sphi 0, %s22
    %s25 = sphi 0, %s23
    %s26 = sphi 0, %s24
    %s38 = sphi 0, %s40
    %s41 = sphi 0, %s38
    %s42 = sphi 0, %s41
    %s58 = sphi 0, %s42
    %s66 = sphi 0, %s68
    %s69 = sphi 0, %s66
    %s70 = sphi 0, %s69
    %s86 = sphi 0, %s70
    %s94 = sphi 0, %s96
    %s97 = sphi 0, %s94
    %s98 = sphi 0, %s97
    %s114 = sphi 0, %s98
    %s118 = sphi 0, %s118
    %s120 = sphi 0, %s118
    %s121 = sphi 0, %s120
    %s135 = sphi 0, %s121
    %s139 = sphi 0, %s139
    %s141 = sphi 0, %s139
    %s142 = sphi 0, %s141
    %s156 = sphi 0, %s142
    %s160 = sphi 0, %s160
    %s162 = sphi 0, %s160
    %s163 = sphi 0, %s162
    %s177 = sphi 0, %s163
    %s181 = sphi 0, %s181
    %s183 = sphi 0, %s181
    %s184 = sphi 0, %s183
    %s198 = sphi 0, %s184
    %s202 = sphi 0, %s202
    %s204 = sphi 0, %s202
    %s205 = sphi 0, %s204
    %s219 = sphi 0, %s205
    %s225 = sphi 0, %s227
    %s228 = sphi 0, %s225
    %s229 = sphi 0, %s228
    %s245 = sphi 0, %s229
  $region4: #{tpu_custom_call.1} parent=0 // loop_header_branch
    %17 = sbr.rel (%p15) target = $region8
  $region5: #{tpu_custom_call.1} parent=0 // loop_body
    %s19 = ssub.s32 %s14, 1
    %s20 = ssub.s32 %s14, 2
    %s27 = sadd.s32 1, %s22
    %p28 = scmp.ge.s32.totalorder %s27, 1
    %s29 = scalar_select %p28, 0, %s27
    %s30 = sadd.s32 1, %s21
    %s31 = scalar_select %p28, %s30, %s21
    %p32 = scmp.ge.s32.totalorder %s31, 2
    %s33 = scalar_select %p32, 0, %s31
    %s34 = ssub.s32 %s21, %s33
    %s35 = ssub.s32 %s22, %s29
    %s36 = sor.u32 %s34, %s35
    %p37 = scmp.eq.s32.totalorder %s36, 0
    %s39 = sadd.s32 %s38, 1
    %s40 = scalar_select %p37, %s38, %s39
    %p43 = pneg %p37
    %p44 = scmp.eq.s32.totalorder %s14, 1
    %p45 = por %p43, %p44
    %p46 = scmp.ne.s32.totalorder %s38, %s41
    %p47 = scmp.eq.s32.totalorder %s14, 0
    %p48 = por %p46, %p47
    %p49 = scmp.ne.s32.totalorder %s38, %s41
    %p50 = scmp.eq.s32.totalorder %s19, 1
    %p51 = por %p49, %p50
    %p52 = scmp.ne.s32.totalorder %s41, %s42
    %p53 = scmp.eq.s32.totalorder %s19, 0
    %p54 = por %p52, %p53
    %p55 = scmp.ne.s32.totalorder %s41, %s42
    %p56 = scmp.eq.s32.totalorder %s20, 1
    %p57 = por %p55, %p56
    %p59 = scmp.ne.s32.totalorder %s42, %s58
    %p60 = scmp.eq.s32.totalorder %s20, 0
    %p61 = por %p59, %p60
    %s62 = ssub.s32 %s21, %s33
    %s63 = ssub.s32 %s22, %s29
    %s64 = sor.u32 %s62, %s63
    %p65 = scmp.eq.s32.totalorder %s64, 0
    %s67 = sadd.s32 %s66, 1
    %s68 = scalar_select %p65, %s66, %s67
    %p71 = pneg %p65
    %p72 = scmp.eq.s32.totalorder %s14, 1
    %p73 = por %p71, %p72
    %p74 = scmp.ne.s32.totalorder %s66, %s69
    %p75 = scmp.eq.s32.totalorder %s14, 0
    %p76 = por %p74, %p75
    %p77 = scmp.ne.s32.totalorder %s66, %s69
    %p78 = scmp.eq.s32.totalorder %s19, 1
    %p79 = por %p77, %p78
    %p80 = scmp.ne.s32.totalorder %s69, %s70
    %p81 = scmp.eq.s32.totalorder %s19, 0
    %p82 = por %p80, %p81
    %p83 = scmp.ne.s32.totalorder %s69, %s70
    %p84 = scmp.eq.s32.totalorder %s20, 1
    %p85 = por %p83, %p84
    %p87 = scmp.ne.s32.totalorder %s70, %s86
    %p88 = scmp.eq.s32.totalorder %s20, 0
    %p89 = por %p87, %p88
    %s90 = ssub.s32 %s21, %s33
    %s91 = ssub.s32 %s22, %s29
    %s92 = sor.u32 %s90, %s91
    %p93 = scmp.eq.s32.totalorder %s92, 0
    %s95 = sadd.s32 %s94, 1
    %s96 = scalar_select %p93, %s94, %s95
    %p99 = pneg %p93
    %p100 = scmp.eq.s32.totalorder %s14, 1
    %p101 = por %p99, %p100
    %p102 = scmp.ne.s32.totalorder %s94, %s97
    %p103 = scmp.eq.s32.totalorder %s14, 0
    %p104 = por %p102, %p103
    %p105 = scmp.ne.s32.totalorder %s94, %s97
    %p106 = scmp.eq.s32.totalorder %s19, 1
    %p107 = por %p105, %p106
    %p108 = scmp.ne.s32.totalorder %s97, %s98
    %p109 = scmp.eq.s32.totalorder %s19, 0
    %p110 = por %p108, %p109
    %p111 = scmp.ne.s32.totalorder %s97, %s98
    %p112 = scmp.eq.s32.totalorder %s20, 1
    %p113 = por %p111, %p112
    %p115 = scmp.ne.s32.totalorder %s98, %s114
    %p116 = scmp.eq.s32.totalorder %s20, 0
    %p117 = por %p115, %p116
    %s119 = sadd.s32 %s118, 1
    %p122 = scmp.eq.s32.totalorder %s14, 1
    %p123 = scmp.ne.s32.totalorder %s118, %s120
    %p124 = scmp.eq.s32.totalorder %s14, 0
    %p125 = por %p123, %p124
    %p126 = scmp.ne.s32.totalorder %s118, %s120
    %p127 = scmp.eq.s32.totalorder %s19, 1
    %p128 = por %p126, %p127
    %p129 = scmp.ne.s32.totalorder %s120, %s121
    %p130 = scmp.eq.s32.totalorder %s19, 0
    %p131 = por %p129, %p130
    %p132 = scmp.ne.s32.totalorder %s120, %s121
    %p133 = scmp.eq.s32.totalorder %s20, 1
    %p134 = por %p132, %p133
    %p136 = scmp.ne.s32.totalorder %s121, %s135
    %p137 = scmp.eq.s32.totalorder %s20, 0
    %p138 = por %p136, %p137
    %s140 = sadd.s32 %s139, 1
    %p143 = scmp.eq.s32.totalorder %s14, 1
    %p144 = scmp.ne.s32.totalorder %s139, %s141
    %p145 = scmp.eq.s32.totalorder %s14, 0
    %p146 = por %p144, %p145
    %p147 = scmp.ne.s32.totalorder %s139, %s141
    %p148 = scmp.eq.s32.totalorder %s19, 1
    %p149 = por %p147, %p148
    %p150 = scmp.ne.s32.totalorder %s141, %s142
    %p151 = scmp.eq.s32.totalorder %s19, 0
    %p152 = por %p150, %p151
    %p153 = scmp.ne.s32.totalorder %s141, %s142
    %p154 = scmp.eq.s32.totalorder %s20, 1
    %p155 = por %p153, %p154
    %p157 = scmp.ne.s32.totalorder %s142, %s156
    %p158 = scmp.eq.s32.totalorder %s20, 0
    %p159 = por %p157, %p158
    %s161 = sadd.s32 %s160, 1
    %p164 = scmp.eq.s32.totalorder %s14, 1
    %p165 = scmp.ne.s32.totalorder %s160, %s162
    %p166 = scmp.eq.s32.totalorder %s14, 0
    %p167 = por %p165, %p166
    %p168 = scmp.ne.s32.totalorder %s160, %s162
    %p169 = scmp.eq.s32.totalorder %s19, 1
    %p170 = por %p168, %p169
    %p171 = scmp.ne.s32.totalorder %s162, %s163
    %p172 = scmp.eq.s32.totalorder %s19, 0
    %p173 = por %p171, %p172
    %p174 = scmp.ne.s32.totalorder %s162, %s163
    %p175 = scmp.eq.s32.totalorder %s20, 1
    %p176 = por %p174, %p175
    %p178 = scmp.ne.s32.totalorder %s163, %s177
    %p179 = scmp.eq.s32.totalorder %s20, 0
    %p180 = por %p178, %p179
    %s182 = sadd.s32 %s181, 1
    %p185 = scmp.eq.s32.totalorder %s14, 1
    %p186 = scmp.ne.s32.totalorder %s181, %s183
    %p187 = scmp.eq.s32.totalorder %s14, 0
    %p188 = por %p186, %p187
    %p189 = scmp.ne.s32.totalorder %s181, %s183
    %p190 = scmp.eq.s32.totalorder %s19, 1
    %p191 = por %p189, %p190
    %p192 = scmp.ne.s32.totalorder %s183, %s184
    %p193 = scmp.eq.s32.totalorder %s19, 0
    %p194 = por %p192, %p193
    %p195 = scmp.ne.s32.totalorder %s183, %s184
    %p196 = scmp.eq.s32.totalorder %s20, 1
    %p197 = por %p195, %p196
    %p199 = scmp.ne.s32.totalorder %s184, %s198
    %p200 = scmp.eq.s32.totalorder %s20, 0
    %p201 = por %p199, %p200
    %s203 = sadd.s32 %s202, 1
    %p206 = scmp.eq.s32.totalorder %s14, 1
    %p207 = scmp.ne.s32.totalorder %s202, %s204
    %p208 = scmp.eq.s32.totalorder %s14, 0
    %p209 = por %p207, %p208
    %p210 = scmp.ne.s32.totalorder %s202, %s204
    %p211 = scmp.eq.s32.totalorder %s19, 1
    %p212 = por %p210, %p211
    %p213 = scmp.ne.s32.totalorder %s204, %s205
    %p214 = scmp.eq.s32.totalorder %s19, 0
    %p215 = por %p213, %p214
    %p216 = scmp.ne.s32.totalorder %s204, %s205
    %p217 = scmp.eq.s32.totalorder %s20, 1
    %p218 = por %p216, %p217
    %p220 = scmp.ne.s32.totalorder %s205, %s219
    %p221 = scmp.eq.s32.totalorder %s20, 0
    %p222 = por %p220, %p221
    %s223 = ssub.s32 %s21, %s33
    %p224 = scmp.eq.s32.totalorder %s223, 0
    %s226 = sadd.s32 %s225, 1
    %s227 = scalar_select %p224, %s225, %s226
    %p230 = pneg %p224
    %p231 = scmp.eq.s32.totalorder %s14, 1
    %p232 = por %p230, %p231
    %p233 = scmp.ne.s32.totalorder %s225, %s228
    %p234 = scmp.eq.s32.totalorder %s14, 0
    %p235 = por %p233, %p234
    %p236 = scmp.ne.s32.totalorder %s225, %s228
    %p237 = scmp.eq.s32.totalorder %s19, 1
    %p238 = por %p236, %p237
    %p239 = scmp.ne.s32.totalorder %s228, %s229
    %p240 = scmp.eq.s32.totalorder %s19, 0
    %p241 = por %p239, %p240
    %p242 = scmp.ne.s32.totalorder %s228, %s229
    %p243 = scmp.eq.s32.totalorder %s20, 1
    %p244 = por %p242, %p243
    %p246 = scmp.ne.s32.totalorder %s229, %s245
    %p247 = scmp.eq.s32.totalorder %s20, 0
    %p248 = por %p246, %p247
    %p249 = scmp.le.s32.totalorder 1, %s14
    %p250 = scmp.lt.s32.totalorder %s14, 3
    %p251 = pnand %p249, %p250
    %p252 = pneg %p251
    // Predicated region
    $region9: #{tpu_custom_call.1} parent=5 // pred_check
      _
    $region10: #{tpu_custom_call.1} parent=5 // pred_check_branch
      %254 = sbr.rel (%p251) target = $region12
    $region11: #{tpu_custom_call.1} parent=5 // pred_region
      %s255 = ssub.s32 %s14, 1
      // Predicated region
      $region13: #{tpu_custom_call.1} parent=11 // pred_check
        %p256 = pneg %p131
      $region14: #{tpu_custom_call.1} parent=11 // pred_check_branch
        %258 = sbr.rel (%p256) target = $region16
      $region15: #{tpu_custom_call.1} parent=11 // pred_region
        _
      $region16: #{tpu_custom_call.1} parent=11 // pred_fallthru
        _
      // Predicated region
      $region17: #{tpu_custom_call.1} parent=11 // pred_check
        %p259 = pneg %p152
      $region18: #{tpu_custom_call.1} parent=11 // pred_check_branch
        %261 = sbr.rel (%p259) target = $region20
      $region19: #{tpu_custom_call.1} parent=11 // pred_region
        _
      $region20: #{tpu_custom_call.1} parent=11 // pred_fallthru
        _
      // Predicated region
      $region21: #{tpu_custom_call.1} parent=11 // pred_check
        %p262 = pneg %p173
      $region22: #{tpu_custom_call.1} parent=11 // pred_check_branch
        %264 = sbr.rel (%p262) target = $region24
      $region23: #{tpu_custom_call.1} parent=11 // pred_region
        _
      $region24: #{tpu_custom_call.1} parent=11 // pred_fallthru
        _
      // Predicated region
      $region25: #{tpu_custom_call.1} parent=11 // pred_check
        %p265 = pneg %p194
      $region26: #{tpu_custom_call.1} parent=11 // pred_check_branch
        %267 = sbr.rel (%p265) target = $region28
      $region27: #{tpu_custom_call.1} parent=11 // pred_region
        _
      $region28: #{tpu_custom_call.1} parent=11 // pred_fallthru
        _
      // Predicated region
      $region29: #{tpu_custom_call.1} parent=11 // pred_check
        %p268 = pneg %p215
      $region30: #{tpu_custom_call.1} parent=11 // pred_check_branch
        %270 = sbr.rel (%p268) target = $region32
      $region31: #{tpu_custom_call.1} parent=11 // pred_region
        _
      $region32: #{tpu_custom_call.1} parent=11 // pred_fallthru
        _
    $region12: #{tpu_custom_call.1} parent=5 // pred_fallthru
      _
    %p271 = scmp.lt.s32.totalorder %s14, 2
    // Predicated region
    $region33: #{tpu_custom_call.1} parent=5 // pred_check
      %p272 = pneg %p271
    $region34: #{tpu_custom_call.1} parent=5 // pred_check_branch
      %274 = sbr.rel (%p272) target = $region36
    $region35: #{tpu_custom_call.1} parent=5 // pred_region
      // Predicated region
      $region37: #{tpu_custom_call.1} parent=35 // pred_check
        %p275 = pneg %p48
      $region38: #{tpu_custom_call.1} parent=35 // pred_check_branch
        %277 = sbr.rel (%p275) target = $region40
      $region39: #{tpu_custom_call.1} parent=35 // pred_region
        %s278 = smul.u32 2, %s22
        %p279 = scmp.lt.s32.totalorder %s21, 1
        %s280 = scalar_select %p279, %s21, 1
        %p281 = scmp.lt.s32.totalorder %s278, 1
        %s282 = scalar_select %p281, %s278, 1
        %s283 = smul.addr %s280, 2
        %s284 = sadd.s32 %s282, %s283
        %s285 = smul.addr %s284, 2
        %s286 = scalar_lea.vmem %s0, %s285
        %s287 = smul.u32 2, %s22
      $region40: #{tpu_custom_call.1} parent=35 // pred_fallthru
        _
      // Predicated region
      $region41: #{tpu_custom_call.1} parent=35 // pred_check
        %p288 = pneg %p76
      $region42: #{tpu_custom_call.1} parent=35 // pred_check_branch
        %290 = sbr.rel (%p288) target = $region44
      $region43: #{tpu_custom_call.1} parent=35 // pred_region
        %s291 = smul.u32 2, %s22
        %p292 = scmp.lt.s32.totalorder %s21, 1
        %s293 = scalar_select %p292, %s21, 1
        %p294 = scmp.lt.s32.totalorder %s291, 1
        %s295 = scalar_select %p294, %s291, 1
        %s296 = smul.addr %s293, 2
        %s297 = sadd.s32 %s295, %s296
        %s298 = smul.addr %s297, 2
        %s299 = scalar_lea.vmem %s1, %s298
        %s300 = smul.u32 2, %s22
      $region44: #{tpu_custom_call.1} parent=35 // pred_fallthru
        _
      // Predicated region
      $region45: #{tpu_custom_call.1} parent=35 // pred_check
        %p301 = pneg %p104
      $region46: #{tpu_custom_call.1} parent=35 // pred_check_branch
        %303 = sbr.rel (%p301) target = $region48
      $region47: #{tpu_custom_call.1} parent=35 // pred_region
        %s304 = smul.u32 2, %s22
        %p305 = scmp.lt.s32.totalorder %s21, 1
        %s306 = scalar_select %p305, %s21, 1
        %p307 = scmp.lt.s32.totalorder %s304, 1
        %s308 = scalar_select %p307, %s304, 1
        %s309 = smul.addr %s306, 2
        %s310 = sadd.s32 %s308, %s309
        %s311 = smul.addr %s310, 2
        %s312 = scalar_lea.vmem %s2, %s311
        %s313 = smul.u32 2, %s22
      $region48: #{tpu_custom_call.1} parent=35 // pred_fallthru
        _
    $region36: #{tpu_custom_call.1} parent=5 // pred_fallthru
      _
    %p314 = scmp.le.s32.totalorder 1, %s14
    %p315 = scmp.lt.s32.totalorder %s14, 3
    %p316 = pnand %p314, %p315
    %p317 = pneg %p316
    // Predicated region
    $region49: #{tpu_custom_call.1} parent=5 // pred_check
      _
    $region50: #{tpu_custom_call.1} parent=5 // pred_check_branch
      %319 = sbr.rel (%p316) target = $region52
    $region51: #{tpu_custom_call.1} parent=5 // pred_region
      %s320 = ssub.s32 %s14, 1
      %s321 = smul.u32 2, %s24
      %p322 = scmp.lt.s32.totalorder %s23, 1
      %s323 = scalar_select %p322, %s23, 1
      %p324 = scmp.lt.s32.totalorder %s321, 1
      %s325 = scalar_select %p324, %s321, 1
      %s326 = smul.addr %s323, 2
      %s327 = sadd.s32 %s325, %s326
      %s328 = smul.addr %s327, 2
      %s329 = scalar_lea.vmem %s0, %s328
      %p330 = pneg %p54
      %p331 = pneg %p51
      %s332 = smul.u32 2, %s24
      %p333 = scmp.lt.s32.totalorder %s23, 1
      %s334 = scalar_select %p333, %s23, 1
      %p335 = scmp.lt.s32.totalorder %s332, 1
      %s336 = scalar_select %p335, %s332, 1
      %s337 = smul.addr %s334, 2
      %s338 = sadd.s32 %s336, %s337
      %s339 = smul.addr %s338, 2
      %s340 = scalar_lea.vmem %s1, %s339
      %p341 = pneg %p82
      %p342 = pneg %p79
      %s343 = smul.u32 2, %s24
      %p344 = scmp.lt.s32.totalorder %s23, 1
      %s345 = scalar_select %p344, %s23, 1
      %p346 = scmp.lt.s32.totalorder %s343, 1
      %s347 = scalar_select %p346, %s343, 1
      %s348 = smul.addr %s345, 2
      %s349 = sadd.s32 %s347, %s348
      %s350 = smul.addr %s349, 2
      %s351 = scalar_lea.vmem %s2, %s350
      %p352 = pneg %p110
      %p353 = pneg %p107
      %p354 = pneg %p131
      %p355 = pneg %p128
      %p356 = pneg %p152
      %p357 = pneg %p149
      %p358 = pneg %p173
      %p359 = pneg %p170
      %p360 = pneg %p194
      %p361 = pneg %p191
      %p362 = pneg %p215
      %p363 = pneg %p212
      %p364 = pneg %p241
      %p365 = pneg %p238
      %p366 = scmp.lt.s32.totalorder %s23, 1
      %s367 = scalar_select %p366, %s23, 1
      %s368 = scalar_lea.vmem %s8, %s367
      %s369 = smul.u32 2, %s24
      %p370 = scmp.lt.s32.totalorder %s23, 1
      %s371 = scalar_select %p370, %s23, 1
      %p372 = scmp.lt.s32.totalorder %s369, 1
      %s373 = scalar_select %p372, %s369, 1
      %s374 = smul.addr %s371, 2
      %s375 = sadd.s32 %s373, %s374
      %s376 = smul.addr %s375, 2
      %s377 = scalar_lea.vmem %s0, %s376
      %s378 = smul.u32 2, %s24
      %s379 = smul.u32 2, %s24
      %p380 = scmp.lt.s32.totalorder %s23, 1
      %s381 = scalar_select %p380, %s23, 1
      %p382 = scmp.lt.s32.totalorder %s379, 1
      %s383 = scalar_select %p382, %s379, 1
      %s384 = smul.addr %s381, 2
      %s385 = sadd.s32 %s383, %s384
      %s386 = smul.addr %s385, 2
      %s387 = scalar_lea.vmem %s1, %s386
      %s388 = smul.u32 2, %s24
      %s389 = smul.u32 2, %s24
      %p390 = scmp.lt.s32.totalorder %s23, 1
      %s391 = scalar_select %p390, %s23, 1
      %p392 = scmp.lt.s32.totalorder %s389, 1
      %s393 = scalar_select %p392, %s389, 1
      %s394 = smul.addr %s391, 2
      %s395 = sadd.s32 %s393, %s394
      %s396 = smul.addr %s395, 2
      %s397 = scalar_lea.vmem %s2, %s396
      %s398 = smul.u32 2, %s24
      %p399 = scmp.lt.s32.totalorder %s23, 1
      %s400 = scalar_select %p399, %s23, 1
      %s401 = scalar_lea.vmem %s8, %s400
      %p403 = scmp.eq.s32.totalorder %s24, 0
      // Predicated region
      $region53: #{tpu_custom_call.1} parent=51 // pred_check
        %p404 = pneg %p403
      $region54: #{tpu_custom_call.1} parent=51 // pred_check_branch
        %406 = sbr.rel (%p404) target = $region56
      $region55: #{tpu_custom_call.1} parent=51 // pred_region
        %vm407 = vcmask 0
        %408 = vst.msk [vmem:[%s401] sm:$0x1] %vm407, 0.0
      $region56: #{tpu_custom_call.1} parent=51 // pred_fallthru
        _
      %v409 = vld [vmem:[%s3] sm:$0xf]
      %v410 = vld [vmem:[%s3 + $0x4] sm:$0xf]
      %v411 = vld [vmem:[%s3 + $0x8] sm:$0xf]
      %v412 = vld [vmem:[%s3 + $0xc] sm:$0xf]
      %v413 = vld [vmem:[%s377] sm:$0xf]
      %v414 = vld [vmem:[%s4] sm:$0xf]
      %v415 = vld [vmem:[%s4 + $0x4] sm:$0xf]
      %v416 = vld [vmem:[%s4 + $0x8] sm:$0xf]
      %v417 = vld [vmem:[%s4 + $0xc] sm:$0xf]
      %v418 = vld [vmem:[%s387] sm:$0xf]
      %v423 = vunpack.c.l.b16 %v414
      %v424 = vunpack.c.l.b16 %v415
      %v425 = vunpack.c.l.b16 %v416
      %v426 = vunpack.c.l.b16 %v417
      %v427 = vpack.c.b16 %v424, %v423
      %v428 = vpack.c.b16 %v426, %v425
      %v431 = vunpack.c.l.s4 1983009808
      %v432 = vunpack.c.0.s8 %v431
      %v433 = vlaneseq
      %v434 = vshrl.u32 %v433, 7
      %v435 = vsub.s32 %v432, %v434
      %v436 = vrot.slane %v418, %v435
      %v437 = vcombine.high %v436, %v436
      %vm438 = vcmask 31744
      %v440 = vsel %vm438, %v427, 0
      %v443 = vsel %vm438, %v428, 0
      %vm445 = vcmask 1041408
      %v447 = vsel %vm445, %v436, 0
      %v450 = vsel %vm445, %v437, 0
      %452 = vmatprep.subr.bf16.mxu0 %v450
      %453 = vmatpush1.bf16.msra.mxu0 %v447
      %454 = vmatprep.subr.bf16.mxu0 0
      %455 = vmatpush1.bf16.msra.mxu0 0
      %456 = vmatprep.subr.bf16.mxu0 0
      %457 = vmatpush1.bf16.msra.mxu0 0
      %458 = vmatprep.subr.bf16.mxu0 0
      %459 = vmatpush1.bf16.msra.mxu0 0
      %460 = vmatprep.subr.bf16.mxu0 0
      %461 = vmatpush1.bf16.msra.mxu0 0
      %462 = vmatprep.subr.bf16.mxu0 0
      %463 = vmatpush1.bf16.msra.mxu0 0
      %464 = vmatprep.subr.bf16.mxu0 0
      %465 = vmatpush1.bf16.msra.mxu0 0
      %466 = vmatprep.subr.bf16.mxu0 0
      %467 = vmatpush1.bf16.msra.mxu0 0
      %468 = vmatprep.subr.bf16.mxu0 0
      %469 = vmatpush1.bf16.msra.mxu0 0
      %470 = vmatprep.subr.bf16.mxu0 0
      %471 = vmatpush1.bf16.msra.mxu0 0
      %472 = vmatprep.subr.bf16.mxu0 0
      %473 = vmatpush1.bf16.msra.mxu0 0
      %474 = vmatprep.subr.bf16.mxu0 0
      %475 = vmatpush1.bf16.msra.mxu0 0
      %476 = vmatprep.subr.bf16.mxu0 0
      %477 = vmatpush1.bf16.msra.mxu0 0
      %478 = vmatprep.subr.bf16.mxu0 0
      %479 = vmatpush1.bf16.msra.mxu0 0
      %480 = vmatprep.subr.bf16.mxu0 0
      %481 = vmatpush1.bf16.msra.mxu0 0
      %482 = vmatprep.subr.bf16.mxu0 0
      %483 = vmatpush1.bf16.msra.mxu0 0
      %484 = vmatprep.mubr.bf16.mxu0 0
      %485 = vmatmul.mubr.bf16.gmra.mrb[0].mxu0 %v440
      %v486 = vpop.f32.mrb[0].mxu0
      %v487 = vadd.f32 0.0, %v486
      %v488 = vpop.f32.mrb[0].mxu0
      %v489 = vadd.f32 0.0, %v488
      %v490 = vpop.f32.mrb[0].mxu0
      %v491 = vadd.f32 0.0, %v490
      %v492 = vpop.f32.mrb[0].mxu0
      %v493 = vadd.f32 0.0, %v492
      %494 = vmatprep.mubr.bf16.mxu0 0
      %495 = vmatmul.mubr.bf16.gmra.mrb[0].mxu0 %v443
      %v496 = vpop.f32.mrb[0].mxu0
      %v497 = vadd.f32 0.0, %v496
      %v498 = vpop.f32.mrb[0].mxu0
      %v499 = vadd.f32 0.0, %v498
      %v500 = vpop.f32.mrb[0].mxu0
      %v501 = vadd.f32 0.0, %v500
      %v502 = vpop.f32.mrb[0].mxu0
      %v503 = vadd.f32 0.0, %v502
      %504 = vdwg.mxu0
      %v509 = vunpack.c.l.b16 %v409
      %v510 = vunpack.c.l.b16 %v410
      %v511 = vunpack.c.l.b16 %v411
      %v512 = vunpack.c.l.b16 %v412
      %v513 = vpack.c.b16 %v510, %v509
      %v514 = vpack.c.b16 %v512, %v511
      %v517 = vunpack.c.l.s4 1983009808
      %v518 = vunpack.c.0.s8 %v517
      %v519 = vlaneseq
      %v520 = vshrl.u32 %v519, 7
      %v521 = vsub.s32 %v518, %v520
      %v522 = vrot.slane %v413, %v521
      %v523 = vcombine.high %v522, %v522
      %v525 = vsel %vm438, %v513, 0
      %v528 = vsel %vm438, %v514, 0
      %v531 = vsel %vm445, %v522, 0
      %v534 = vsel %vm445, %v523, 0
      %536 = vmatprep.subr.bf16.mxu0 %v534
      %537 = vmatpush1.bf16.msra.mxu0 %v531
      %538 = vmatprep.subr.bf16.mxu0 0
      %539 = vmatpush1.bf16.msra.mxu0 0
      %540 = vmatprep.subr.bf16.mxu0 0
      %541 = vmatpush1.bf16.msra.mxu0 0
      %542 = vmatprep.subr.bf16.mxu0 0
      %543 = vmatpush1.bf16.msra.mxu0 0
      %544 = vmatprep.subr.bf16.mxu0 0
      %545 = vmatpush1.bf16.msra.mxu0 0
      %546 = vmatprep.subr.bf16.mxu0 0
      %547 = vmatpush1.bf16.msra.mxu0 0
      %548 = vmatprep.subr.bf16.mxu0 0
      %549 = vmatpush1.bf16.msra.mxu0 0
      %550 = vmatprep.subr.bf16.mxu0 0
      %551 = vmatpush1.bf16.msra.mxu0 0
      %552 = vmatprep.subr.bf16.mxu0 0
      %553 = vmatpush1.bf16.msra.mxu0 0
      %554 = vmatprep.subr.bf16.mxu0 0
      %555 = vmatpush1.bf16.msra.mxu0 0
      %556 = vmatprep.subr.bf16.mxu0 0
      %557 = vmatpush1.bf16.msra.mxu0 0
      %558 = vmatprep.subr.bf16.mxu0 0
      %559 = vmatpush1.bf16.msra.mxu0 0
      %560 = vmatprep.subr.bf16.mxu0 0
      %561 = vmatpush1.bf16.msra.mxu0 0
      %562 = vmatprep.subr.bf16.mxu0 0
      %563 = vmatpush1.bf16.msra.mxu0 0
      %564 = vmatprep.subr.bf16.mxu0 0
      %565 = vmatpush1.bf16.msra.mxu0 0
      %566 = vmatprep.subr.bf16.mxu0 0
      %567 = vmatpush1.bf16.msra.mxu0 0
      %568 = vmatprep.mubr.bf16.mxu0 0
      %569 = vmatmul.mubr.bf16.gmra.mrb[0].mxu0 %v525
      %v570 = vpop.f32.mrb[0].mxu0
      %v571 = vadd.f32 %v487, %v570
      %v572 = vpop.f32.mrb[0].mxu0
      %v573 = vadd.f32 %v489, %v572
      %v574 = vpop.f32.mrb[0].mxu0
      %v575 = vadd.f32 %v491, %v574
      %v576 = vpop.f32.mrb[0].mxu0
      %v577 = vadd.f32 %v493, %v576
      %578 = vmatprep.mubr.bf16.mxu0 0
      %579 = vmatmul.mubr.bf16.gmra.mrb[0].mxu0 %v528
      %v580 = vpop.f32.mrb[0].mxu0
      %v581 = vadd.f32 %v497, %v580
      %v582 = vpop.f32.mrb[0].mxu0
      %v583 = vadd.f32 %v499, %v582
      %v584 = vpop.f32.mrb[0].mxu0
      %v585 = vadd.f32 %v501, %v584
      %v586 = vpop.f32.mrb[0].mxu0
      %v587 = vadd.f32 %v503, %v586
      %588 = vdwg.mxu0
      %v589 = vld [vmem:[%s5] sm:$0xf]
      %v590 = vld [vmem:[%s5 + $0x4] sm:$0xf]
      %v591 = vld [vmem:[%s5 + $0x8] sm:$0xf]
      %v592 = vld [vmem:[%s5 + $0xc] sm:$0xf]
      %v593 = vunpack.c.l.bf16 %v589
      %v594 = vunpack.c.l.bf16 %v590
      %v595 = vunpack.c.l.bf16 %v591
      %v596 = vunpack.c.l.bf16 %v592
      %598 = vset.pattern.permute.xlu0 0
      %599 = vperm.xlu0 %598, %v593
      %v600 = vpop.permute.xlu0 %599
      %603 = vset.pattern.permute.xlu0 0
      %604 = vperm.xlu0 %603, %v594
      %v605 = vpop.permute.xlu0 %604
      %608 = vset.pattern.permute.xlu0 0
      %609 = vperm.xlu0 %608, %v595
      %v610 = vpop.permute.xlu0 %609
      %613 = vset.pattern.permute.xlu0 0
      %614 = vperm.xlu0 %613, %v596
      %v615 = vpop.permute.xlu0 %614
      %v617 = vadd.f32 %v571, %v600
      %v618 = vadd.f32 %v573, %v600
      %v619 = vadd.f32 %v575, %v605
      %v620 = vadd.f32 %v577, %v605
      %v621 = vadd.f32 %v581, %v610
      %v622 = vadd.f32 %v583, %v610
      %v623 = vadd.f32 %v585, %v615
      %v624 = vadd.f32 %v587, %v615
      %v625 = vmax.f32 %v617, 0.0
      %v626 = vmax.f32 %v618, 0.0
      %v627 = vmax.f32 %v619, 0.0
      %v628 = vmax.f32 %v620, 0.0
      %v629 = vmax.f32 %v621, 0.0
      %v630 = vmax.f32 %v622, 0.0
      %v631 = vmax.f32 %v623, 0.0
      %v632 = vmax.f32 %v624, 0.0
      %v633 = vld [vmem:[%s6] sm:$0xf]
      %v634 = vpack.c.bf16 %v627, %v625
      %v635 = vpack.c.bf16 %v628, %v626
      %v636 = vpack.c.bf16 %v631, %v629
      %v637 = vpack.c.bf16 %v632, %v630
      %v638 = vld [vmem:[%s7] sm:$0xf]
      %v639 = vunpack.c.l.bf16 %v638
      %641 = vset.pattern.permute.xlu0 0
      %642 = vperm.xlu0 %641, %v639
      %v643 = vpop.permute.xlu0 %642
      %vm645 = vcmask 261120
      %v647 = vsel %vm645, %v633, 0
      %649 = vmatprep.subr.bf16.mxu0 %v635
      %650 = vmatpush1.bf16.msra.mxu0 %v634
      %651 = vmatprep.subr.bf16.mxu0 %v637
      %652 = vmatpush1.bf16.msra.mxu0 %v636
      %653 = vmatprep.subr.bf16.mxu0 0
      %654 = vmatpush1.bf16.msra.mxu0 0
      %655 = vmatprep.subr.bf16.mxu0 0
      %656 = vmatpush1.bf16.msra.mxu0 0
      %657 = vmatprep.subr.bf16.mxu0 0
      %658 = vmatpush1.bf16.msra.mxu0 0
      %659 = vmatprep.subr.bf16.mxu0 0
      %660 = vmatpush1.bf16.msra.mxu0 0
      %661 = vmatprep.subr.bf16.mxu0 0
      %662 = vmatpush1.bf16.msra.mxu0 0
      %663 = vmatprep.subr.bf16.mxu0 0
      %664 = vmatpush1.bf16.msra.mxu0 0
      %665 = vmatprep.subr.bf16.mxu0 0
      %666 = vmatpush1.bf16.msra.mxu0 0
      %667 = vmatprep.subr.bf16.mxu0 0
      %668 = vmatpush1.bf16.msra.mxu0 0
      %669 = vmatprep.subr.bf16.mxu0 0
      %670 = vmatpush1.bf16.msra.mxu0 0
      %671 = vmatprep.subr.bf16.mxu0 0
      %672 = vmatpush1.bf16.msra.mxu0 0
      %673 = vmatprep.subr.bf16.mxu0 0
      %674 = vmatpush1.bf16.msra.mxu0 0
      %675 = vmatprep.subr.bf16.mxu0 0
      %676 = vmatpush1.bf16.msra.mxu0 0
      %677 = vmatprep.subr.bf16.mxu0 0
      %678 = vmatpush1.bf16.msra.mxu0 0
      %679 = vmatprep.subr.bf16.mxu0 0
      %680 = vmatpush1.bf16.msra.mxu0 0
      %681 = vmatprep.mubr.bf16.mxu0 0
      %682 = vmatmul.mubr.bf16.gmra.mrb[0].mxu0 %v647
      %v683 = vpop.f32.mrb[0].mxu0
      %v684 = vadd.f32 %v643, %v683
      %v685 = vpop.f32.mrb[0].mxu0
      %v686 = vadd.f32 %v643, %v685
      %v687 = vpop.f32.mrb[0].mxu0
      %v688 = vpop.f32.mrb[0].mxu0
      %689 = vdwg.mxu0
      %v690 = vld [vmem:[%s397] sm:$0xf]
      %v691 = vunpack.c.l.bf16 %v690
      %v693 = vcombine.high %v691, %v691
      %v695 = vcombine.low %v691, %v691
      %vm697 = vcmask 1043456
      %v698 = vsel %vm697, %v691, %v695
      %v699 = vsel %vm697, %v693, %v691
      %v700 = vsub.f32 %v684, %v698
      %v701 = vsub.f32 %v686, %v699
      %v702 = vand.u32 2147483647, %v700
      %v703 = vand.u32 2147483647, %v701
      %v704 = vld [vmem:[%s401] sm:$0x1]
      %v705 = vadd.f32 %v702, %v703
      %706 = vadd.xlane.f32.xlu0 %v705
      %v707 = vpop.xlane.xlu0 %706
      %v708 = vrot.slane %v707, 4
      %v709 = vadd.f32 %v707, %v708
      %v710 = vrot.slane %v709, 2
      %v711 = vadd.f32 %v709, %v710
      %v712 = vrot.slane %v711, 1
      %v713 = vadd.f32 %v711, %v712
      %s714 = vtos %v713
      %v715 = vstv %s714
      %v716 = vadd.f32 %v704, %v715
      %vm717 = vcmask 0
      %718 = vst.msk [vmem:[%s401] sm:$0x1] %vm717, %v716
      %p719 = scmp.lt.s32.totalorder %s23, 1
      %s720 = scalar_select %p719, %s23, 1
      %s721 = scalar_lea.vmem %s8, %s720
      // Predicated region
      $region57: #{tpu_custom_call.1} parent=51 // pred_check
        %p722 = pneg %p238
      $region58: #{tpu_custom_call.1} parent=51 // pred_check_branch
        %724 = sbr.rel (%p722) target = $region60
      $region59: #{tpu_custom_call.1} parent=51 // pred_region
        _
      $region60: #{tpu_custom_call.1} parent=51 // pred_fallthru
        _
    $region52: #{tpu_custom_call.1} parent=5 // pred_fallthru
      _
    %p725 = scmp.le.s32.totalorder 2, %s14
    // Predicated region
    $region61: #{tpu_custom_call.1} parent=5 // pred_check
      %p726 = pneg %p725
    $region62: #{tpu_custom_call.1} parent=5 // pred_check_branch
      %728 = sbr.rel (%p726) target = $region64
    $region63: #{tpu_custom_call.1} parent=5 // pred_region
      %s729 = ssub.s32 %s14, 2
      // Predicated region
      $region65: #{tpu_custom_call.1} parent=63 // pred_check
        %p730 = pneg %p244
      $region66: #{tpu_custom_call.1} parent=63 // pred_check_branch
        %732 = sbr.rel (%p730) target = $region68
      $region67: #{tpu_custom_call.1} parent=63 // pred_region
        %p733 = scmp.lt.s32.totalorder %s25, 1
        %s734 = scalar_select %p733, %s25, 1
        %s735 = scalar_lea.vmem %s8, %s734
      $region68: #{tpu_custom_call.1} parent=63 // pred_fallthru
        _
    $region64: #{tpu_custom_call.1} parent=5 // pred_fallthru
      _
  $region6: #{tpu_custom_call.1} parent=0 // loop_footer
    %s18 = sadd.s32 1, %s14
  $region7: #{tpu_custom_call.1} parent=0 // loop_footer_branch
    %13 = sbr.rel target = $region3
  $region8: #{tpu_custom_call.1} parent=0 // loop_exit
    _

</llo_original>
